<compile_context>
chip_gen: v5e
topology: v5e:2x2
jax: 0.10.0
libtpu: 0.0.40
codegen_flags: <defaults>
</compile_context>

<pallas_src>
import functools

import jax
import jax.numpy as jnp
from jax import lax
from jax.experimental import pallas as pl
from jax.experimental.pallas import tpu as pltpu


def _pick_tile(dim, target, gran):
    """Largest multiple of `gran` <= target that divides dim (else full dim)."""
    if dim <= target:
        return dim
    t = (target // gran) * gran
    while t >= gran:
        if dim % t == 0:
            return t
        t -= gran
    return dim  # no clean divisor: take the whole axis (still correct)


# ----------------------------------------------------------------------------
# Kernel 1: tiled fused linear (matmul + bias) for the qkv and proj projections.
# ----------------------------------------------------------------------------
def _linear_kernel_acc(x_ref, w_ref, b_ref, o_ref, acc_ref):
    # x: (tm, tk)  w: (tk, tn)  b: (1, tn)  o: (tm, tn)  acc: (tm, tn) f32
    @pl.when(pl.program_id(2) == 0)
    def _():
        acc_ref[...] = jnp.zeros_like(acc_ref)

    acc_ref[...] += jnp.dot(
        x_ref[...], w_ref[...], preferred_element_type=jnp.float32
    )

    @pl.when(pl.program_id(2) == pl.num_programs(2) - 1)
    def _():
        o_ref[...] = (acc_ref[...] + b_ref[...].astype(jnp.float32)).astype(
            o_ref.dtype
        )


def _linear_kernel_single_k(x_ref, w_ref, b_ref, o_ref):
    # Whole K in one tile: no scratch accumulator / init-finalize needed.
    o_ref[...] = (
        jnp.dot(x_ref[...], w_ref[...], preferred_element_type=jnp.float32)
        + b_ref[...].astype(jnp.float32)
    ).astype(o_ref.dtype)


def pallas_linear(x2d, w, b, *, tm=256, tn=256, tk=512):
    M, K = x2d.shape
    _, Nout = w.shape
    tm = _pick_tile(M, tm, 8)       # sublane dim of x / out blocks
    tn = _pick_tile(Nout, tn, 128)  # lane dim of w / out blocks
    tk = _pick_tile(K, tk, 128)     # lane dim of x block, sublane dim of w block
    nk = K // tk
    b2d = b.reshape(1, Nout)

    if nk == 1:
        return pl.pallas_call(
            _linear_kernel_single_k,
            out_shape=jax.ShapeDtypeStruct((M, Nout), x2d.dtype),
            grid_spec=pltpu.PrefetchScalarGridSpec(
                num_scalar_prefetch=0,
                grid=(M // tm, Nout // tn),
                in_specs=[
                    pl.BlockSpec((tm, K), lambda i, j: (i, 0)),
                    pl.BlockSpec((K, tn), lambda i, j: (0, j)),
                    pl.BlockSpec((1, tn), lambda i, j: (0, j)),
                ],
                out_specs=pl.BlockSpec((tm, tn), lambda i, j: (i, j)),
            ),
            compiler_params=pltpu.CompilerParams(
                dimension_semantics=("parallel", "parallel")
            ),
        )(x2d, w, b2d)

    return pl.pallas_call(
        _linear_kernel_acc,
        out_shape=jax.ShapeDtypeStruct((M, Nout), x2d.dtype),
        grid_spec=pltpu.PrefetchScalarGridSpec(
            num_scalar_prefetch=0,
            grid=(M // tm, Nout // tn, nk),  # reduction axis last
            in_specs=[
                pl.BlockSpec((tm, tk), lambda i, j, k: (i, k)),
                pl.BlockSpec((tk, tn), lambda i, j, k: (k, j)),
                pl.BlockSpec((1, tn), lambda i, j, k: (0, j)),
            ],
            out_specs=pl.BlockSpec((tm, tn), lambda i, j, k: (i, j)),
            scratch_shapes=[pltpu.VMEM((tm, tn), jnp.float32)],
        ),
        compiler_params=pltpu.CompilerParams(
            dimension_semantics=("parallel", "parallel", "arbitrary")
        ),
    )(x2d, w, b2d)


# ----------------------------------------------------------------------------
# Kernel 2: multi-head attention core, reading the fused qkv layout directly.
#
# qkv_ref : (1, N, 3C)  -- channels ordered [q(H,D), k(H,D), v(H,D)]
# ctx_ref : (1, tq, C)  -- written directly in the (B, N, C) output layout
# attn_ref: (1, H, tq, N)
# Grid: (B, N // tq); the whole-sequence qkv block stays resident across the
# query-tile axis (same block index), only the tq-sized outputs move.
# ----------------------------------------------------------------------------
def _mha_kernel(qkv_ref, ctx_ref, attn_ref, *, heads, head_dim, tq, scale):
    C = heads * head_dim
    full_n = qkv_ref.shape[1]

    if tq == full_n:
        q_sl = pl.ds(0, tq)  # static slice (single query tile)
    else:
        q_sl = pl.ds(pl.multiple_of(pl.program_id(1) * tq, tq), tq)

    ctx_heads = []
    for h in range(heads):
        # Per-head slices read straight from the VMEM-resident qkv block:
        # only (tq, D) / (N, D) tiles are materialized per head.
        q_h = qkv_ref[0, q_sl, pl.ds(h * head_dim, head_dim)]            # (tq, D)
        k_h = qkv_ref[0, :, pl.ds(C + h * head_dim, head_dim)]           # (N, D)
        v_h = qkv_ref[0, :, pl.ds(2 * C + h * head_dim, head_dim)]       # (N, D)

        # scores = (q * scale) @ k^T without materializing a transpose
        # (contract the D axis of both operands on the MXU, f32 accumulation).
        s = lax.dot_general(
            q_h * scale, k_h, (((1,), (1,)), ((), ())),
            preferred_element_type=jnp.float32,
        )  # (tq, N) f32

        # numerically-stable softmax; reciprocal on the EUP slot.
        m = jnp.max(s, axis=-1, keepdims=True)
        e = jnp.exp(s - m)
        denom = jnp.sum(e, axis=-1, keepdims=True)
        p = e * pl.reciprocal(denom, approx=True)

        attn_ref[0, h] = p.astype(attn_ref.dtype)  # lane-dense (tq, N) store

        ctx_heads.append(
            jnp.dot(p.astype(v_h.dtype), v_h, preferred_element_type=jnp.float32)
        )  # (tq, D)

    # One lane-dense (tq, C) store in head-major channel order, which is
    # exactly the PyTorch (attn @ v).transpose(1, 2).reshape(B, N, C) layout.
    ctx_ref[0] = jnp.concatenate(ctx_heads, axis=-1).astype(ctx_ref.dtype)


def pallas_mha(qkv_bn3c, heads, scale, *, tq_target=512):
    B, N, C3 = qkv_bn3c.shape
    C = C3 // 3
    D = C // heads
    tq = _pick_tile(N, tq_target, 8)  # bounds per-step attn block for large N
    nq = N // tq

    kernel = functools.partial(
        _mha_kernel, heads=heads, head_dim=D, tq=tq, scale=scale
    )
    # TODO(synk): when the attn matrix is not needed downstream, switch to a
    # flash-style streaming softmax and drop the (B, H, N, N) writeback.
    ctx, attn = pl.pallas_call(
        kernel,
        out_shape=(
            jax.ShapeDtypeStruct((B, N, C), qkv_bn3c.dtype),
            jax.ShapeDtypeStruct((B, heads, N, N), qkv_bn3c.dtype),
        ),
        grid_spec=pltpu.PrefetchScalarGridSpec(
            num_scalar_prefetch=0,
            grid=(B, nq),
            in_specs=[pl.BlockSpec((1, N, C3), lambda b, qi: (b, 0, 0))],
            out_specs=(
                pl.BlockSpec((1, tq, C), lambda b, qi: (b, qi, 0)),
                pl.BlockSpec((1, heads, tq, N), lambda b, qi: (b, 0, qi, 0)),
            ),
        ),
        compiler_params=pltpu.CompilerParams(
            dimension_semantics=("parallel", "arbitrary")
        ),
    )(qkv_bn3c)
    return ctx, attn


# ----------------------------------------------------------------------------
# Full Attention-module forward.
# ----------------------------------------------------------------------------
def attention_forward(x, params, heads):
    # TODO(synk): dropout (attn_drop / proj_drop) is identity (p=0 / eval mode).
    B, N, C = x.shape
    D = C // heads
    scale = float(D) ** (-0.5)

    # qkv projection (tiled Pallas linear kernel)
    qkv = pallas_linear(x.reshape(B * N, C), params["w_qkv"], params["b_qkv"])
    qkv = qkv.reshape(B, N, 3 * C)  # free reshape, no transpose

    # multi-head scaled dot product attention (Pallas kernel)
    ctx, attn = pallas_mha(qkv, heads, scale)  # ctx already (B, N, C)

    # output projection (tiled Pallas linear kernel)
    out = pallas_linear(ctx.reshape(B * N, C), params["w_proj"], params["b_proj"])
    return out.reshape(B, N, C), attn


# ----------------------------------------------------------------------------
# Pure-JAX reference for verification (mirrors the PyTorch module).
# ----------------------------------------------------------------------------
def attention_reference(x, params, heads):
    B, N, C = x.shape
    D = C // heads
    scale = float(D) ** (-0.5)
    qkv = x.reshape(B * N, C) @ params["w_qkv"] + params["b_qkv"]
    qkv = qkv.reshape(B, N, 3, heads, D).transpose(2, 0, 3, 1, 4)
    q, k, v = qkv[0], qkv[1], qkv[2]
    s = jnp.einsum("bhnd,bhmd->bhnm", q, k) * scale
    attn = jax.nn.softmax(s, axis=-1)
    ctx = jnp.einsum("bhnm,bhmd->bhnd", attn, v)
    ctx = ctx.transpose(0, 2, 1, 3).reshape(B, N, C)
    out = ctx.reshape(B * N, C) @ params["w_proj"] + params["b_proj"]
    return out.reshape(B, N, C), attn


if __name__ == "__main__":
    # Small shapes consistent with the module: B=2, N=8 tokens, C=32, 4 heads.
    B, N, C, H = 2, 8, 32, 4

    key = jax.random.PRNGKey(0)
    kx, k1, k2, k3, k4 = jax.random.split(key, 5)

    x = jax.random.normal(kx, (B, N, C), dtype=jnp.float32)

    # Deterministic parameter init (stored as (in, out) = PyTorch weight.T).
    params = {
        "w_qkv": 0.02 * jax.random.normal(k1, (C, 3 * C), dtype=jnp.float32),
        "b_qkv": 0.02 * jax.random.normal(k2, (3 * C,), dtype=jnp.float32),
        "w_proj": 0.02 * jax.random.normal(k3, (C, C), dtype=jnp.float32),
        "b_proj": 0.02 * jax.random.normal(k4, (C,), dtype=jnp.float32),
    }

    out, attn = attention_forward(x, params, H)
    out = jax.block_until_ready(out)
    attn = jax.block_until_ready(attn)

    ref_out, ref_attn = attention_reference(x, params, H)
    assert out.shape == (B, N, C) and attn.shape == (B, H, N, N)
    # Tolerance accounts for the EUP approximate reciprocal in the softmax
    # denominator (pl.reciprocal(..., approx=True)).
    assert jnp.allclose(out, ref_out, atol=2e-3, rtol=2e-3)
    assert jnp.allclose(attn, ref_attn, atol=2e-3, rtol=2e-3)

    print("KERNEL_OK")
</pallas_src>

<mosaic_0001>
module attributes {stable_mosaic.version = 11 : i64} {
  func.func @_linear_kernel_single_k(%arg0: i32, %arg1: i32, %arg2: memref<16x32xf32, #tpu.memory_space<vmem>>, %arg3: memref<32x96xf32, #tpu.memory_space<vmem>>, %arg4: memref<1x96xf32, #tpu.memory_space<vmem>>, %arg5: memref<16x96xf32, #tpu.memory_space<vmem>>) attributes {dimension_semantics = [#tpu.dimension_semantics<parallel>, #tpu.dimension_semantics<parallel>], iteration_bounds = array<i64: 1, 1>, scalar_prefetch = 0 : i64, scratch_operands = 0 : i64, tpu.core_type = #tpu.core_type<tc>, window_params = [{transform_indices = @transform_0, window_bounds = array<i64: 16, 32>}, {transform_indices = @transform_1, window_bounds = array<i64: 32, 96>}, {transform_indices = @transform_2, window_bounds = array<i64: 1, 96>}, {transform_indices = @transform_3, window_bounds = array<i64: 16, 96>}]} {
    %c0 = arith.constant 0 : index
    %c0_0 = arith.constant 0 : index
    %0 = vector.load %arg2[%c0, %c0_0] : memref<16x32xf32, #tpu.memory_space<vmem>>, vector<16x32xf32>
    %c0_1 = arith.constant 0 : index
    %c0_2 = arith.constant 0 : index
    %1 = vector.load %arg3[%c0_1, %c0_2] : memref<32x96xf32, #tpu.memory_space<vmem>>, vector<32x96xf32>
    %cst = arith.constant dense<0.000000e+00> : vector<16x96xf32>
    %2 = tpu.matmul %0, %1, %cst {dimension_numbers = #tpu.dot_dimension_numbers<[1], [0], [0], [1], [0, 0, 1, 1], [], []>} : vector<16x32xf32>, vector<32x96xf32>, vector<16x96xf32> -> vector<16x96xf32>
    %c0_3 = arith.constant 0 : index
    %c0_4 = arith.constant 0 : index
    %3 = vector.load %arg4[%c0_3, %c0_4] : memref<1x96xf32, #tpu.memory_space<vmem>>, vector<1x96xf32>
    %4 = vector.broadcast %3 : vector<1x96xf32> to vector<16x96xf32>
    %5 = arith.addf %2, %4 : vector<16x96xf32>
    %c0_5 = arith.constant 0 : index
    %c0_6 = arith.constant 0 : index
    %6 = vector.load %arg5[%c0_5, %c0_6] : memref<16x96xf32, #tpu.memory_space<vmem>>, vector<16x96xf32>
    tpu.vector_store %arg5[%c0_5, %c0_6], %5 {strides = array<i32>} : memref<16x96xf32, #tpu.memory_space<vmem>>, vector<16x96xf32>,
    return
  }
  func.func @transform_0(%arg0: i32, %arg1: i32) -> (i32, i32) {
    %c0_i32 = arith.constant 0 : i32
    %c0_i32_0 = arith.constant 0 : i32
    return %arg0, %c0_i32 : i32, i32
  }
  func.func @transform_1(%arg0: i32, %arg1: i32) -> (i32, i32) {
    %c0_i32 = arith.constant 0 : i32
    %c0_i32_0 = arith.constant 0 : i32
    return %c0_i32, %arg1 : i32, i32
  }
  func.func @transform_2(%arg0: i32, %arg1: i32) -> (i32, i32) {
    %c0_i32 = arith.constant 0 : i32
    %c0_i32_0 = arith.constant 0 : i32
    return %c0_i32, %arg1 : i32, i32
  }
  func.func @transform_3(%arg0: i32, %arg1: i32) -> (i32, i32) {
    %c0_i32 = arith.constant 0 : i32
    return %arg0, %arg1 : i32, i32
  }
}

</mosaic_0001>

<llo_original>
// kernel: tpu_custom_call.1
$region0: #{tpu_custom_call.1}
  #allocation0 [shape = 'u32[]', space=smem, size = 0x4, offset = 0x4, fixed_abs, tag = 'smem constant byte address 0x4 - core index']
  #allocation1 [shape = 'u32[72,128]{1,0:T(1,128)}', space=vmem, size = 0x9000, scoped, tag = 'internal scratch']
  %s0 = inlined_call_operand.hbm [shape: f32[16,32], index: 0, kind: input, shape index: {}]
  %s1 = inlined_call_operand.hbm [shape: f32[32,96], index: 1, kind: input, shape index: {}]
  %s2 = inlined_call_operand.vmem [shape: f32[1,96], index: 2, kind: input, shape index: {}]
  %s3 = inlined_call_operand.hbm [shape: f32[16,96], index: 3, kind: output, shape index: {}]
  %s4 = sld [smem:[#allocation0]]
  $region30: #{tpu_custom_call.1} parent=0
    _
  %s6 = ssub.s32 1, %s4
  %s7 = scalar_select 0, %s6, %s4
  $region1: #{tpu_custom_call.1} parent=0
    #allocation2 [shape = 'u8[8192]{0}', space=vmem, size = 0x2000, scoped, tag = 'input window, operand 0, single buffered']
    #allocation3 [shape = 's32[1]{0}', space=sflag, size = 0x4, scoped, tag = 'scoped memory for tpu_custom_call.1']
    #allocation4 [shape = 's32[1]{0}', space=sflag, size = 0x4, scoped, tag = 'scoped memory for tpu_custom_call.1']
    #allocation5 [shape = 'u8[16384]{0}', space=vmem, size = 0x4000, scoped, tag = 'input window, operand 1, single buffered']
    #allocation6 [shape = 's32[1]{0}', space=sflag, size = 0x4, scoped, tag = 'scoped memory for tpu_custom_call.1']
    #allocation7 [shape = 'u8[8192]{0}', space=vmem, size = 0x2000, scoped, tag = 'output window, operand 0, single buffered']
    %8 = vsyncpa [#allocation3], 0
    %9 = vsyncpa [#allocation6], 0
    %10 = vsyncpa [#allocation4], 0
    // Predicated region
    $region2: #{tpu_custom_call.1} parent=1 // pred_check
      _
    $region3: #{tpu_custom_call.1} parent=1 // pred_check_branch
      %12 = sbr.rel (0) target = $region5
    $region4: #{tpu_custom_call.1} parent=1 // pred_region
      %14 = vsyncadd [#allocation3], 0
      %s15 = sshll.u32 %s0, 4
      %s16 = int_to_ptr.hbm [resolvable:$true] %s15
      %s17 = sshll.u32 [#allocation2], 4
      %s18 = int_to_ptr.vmem [resolvable:$true] %s17
      %23 = dma.hbm_to_vmem [thread:$0]  %s16, 256, %s18, [#allocation3], 128, 128, 8
    $region5: #{tpu_custom_call.1} parent=1 // pred_fallthru
      _
    // Predicated region
    $region6: #{tpu_custom_call.1} parent=1 // pred_check
      _
    $region7: #{tpu_custom_call.1} parent=1 // pred_check_branch
      %25 = sbr.rel (0) target = $region9
    $region8: #{tpu_custom_call.1} parent=1 // pred_region
      %27 = vsyncadd [#allocation6], 0
      %s28 = sshll.u32 %s1, 4
      %s29 = int_to_ptr.hbm [resolvable:$true] %s28
      %s30 = sshll.u32 [#allocation5], 4
      %s31 = int_to_ptr.vmem [resolvable:$true] %s30
      %36 = dma.hbm_to_vmem [thread:$0]  %s29, 512, %s31, [#allocation6], 128, 128, 8
    $region9: #{tpu_custom_call.1} parent=1 // pred_fallthru
      _
    // Predicated region
    $region10: #{tpu_custom_call.1} parent=1 // pred_check
      _
    $region11: #{tpu_custom_call.1} parent=1 // pred_check_branch
      %38 = sbr.rel (0) target = $region13
    $region12: #{tpu_custom_call.1} parent=1 // pred_region
      _
    $region13: #{tpu_custom_call.1} parent=1 // pred_fallthru
      _
    // Predicated region
    $region14: #{tpu_custom_call.1} parent=1 // pred_check
      _
    $region15: #{tpu_custom_call.1} parent=1 // pred_check_branch
      %40 = sbr.rel (0) target = $region17
    $region16: #{tpu_custom_call.1} parent=1 // pred_region
      %42 = dma.done [#allocation3], 256
    $region17: #{tpu_custom_call.1} parent=1 // pred_fallthru
      _
    // Predicated region
    $region18: #{tpu_custom_call.1} parent=1 // pred_check
      _
    $region19: #{tpu_custom_call.1} parent=1 // pred_check_branch
      %44 = sbr.rel (0) target = $region21
    $region20: #{tpu_custom_call.1} parent=1 // pred_region
      %46 = dma.done [#allocation6], 512
    $region21: #{tpu_custom_call.1} parent=1 // pred_fallthru
      _
    %v47 = vld [vmem:[#allocation2] sm:$0xff]
    %v48 = vld [vmem:[#allocation2 + $0x8] sm:$0xff]
    %v49 = vld [vmem:[#allocation5] sm:$0xff]
    %v50 = vld [vmem:[#allocation5 + $0x8] sm:$0xff]
    %v51 = vld [vmem:[#allocation5 + $0x10] sm:$0xff]
    %v52 = vld [vmem:[#allocation5 + $0x18] sm:$0xff]
    %v53 = vld [vmem:[%s2] sm:$0x1]
    %v55 = vperm.slane %v53, 0
    %vm57 = vcmask 261120
    %v59 = vsel %vm57, %v47, 0
    %v62 = vsel %vm57, %v48, 0
    %64 = vmatpush.msra.mxu0 0.0
    %65 = vmatpush.msra.mxu0 0.0
    %66 = vmatpush.msra.mxu0 0.0
    %67 = vmatpush.msra.mxu0 0.0
    %68 = vmatpush.msra.mxu0 0.0
    %69 = vmatpush.msra.mxu0 0.0
    %70 = vmatpush.msra.mxu0 0.0
    %71 = vmatpush.msra.mxu0 0.0
    %72 = vmatpush.msra.mxu0 0.0
    %73 = vmatpush.msra.mxu0 0.0
    %74 = vmatpush.msra.mxu0 0.0
    %75 = vmatpush.msra.mxu0 0.0
    %76 = vmatpush.msra.mxu0 %v52
    %77 = vmatpush.msra.mxu0 %v51
    %78 = vmatpush.msra.mxu0 %v50
    %79 = vmatpush.msra.mxu0 %v49
    %80 = vmatmul.f32.gmra.mxu0 %v59
    %v81 = vpop.f32.mrf.mxu0
    %v82 = vadd.f32 %v55, %v81
    %83 = vmatmul.f32.gmra.mxu0 %v62
    %v84 = vpop.f32.mrf.mxu0
    %v85 = vadd.f32 %v55, %v84
    %86 = vdwg.mxu0
    %vm87 = vcmask 785408
    %88 = vst.msk [vmem:[#allocation7] sm:$0xff] %vm87, %v82
    %89 = vst.msk [vmem:[#allocation7 + $0x8] sm:$0xff] %vm87, %v85
    // Predicated region
    $region22: #{tpu_custom_call.1} parent=1 // pred_check
      _
    $region23: #{tpu_custom_call.1} parent=1 // pred_check_branch
      %91 = sbr.rel (0) target = $region25
    $region24: #{tpu_custom_call.1} parent=1 // pred_region
      %93 = vsyncadd [#allocation4], 0
      %s94 = sshll.u32 [#allocation7], 4
      %s95 = int_to_ptr.vmem [resolvable:$true] %s94
      %s96 = sshll.u32 %s3, 4
      %s97 = int_to_ptr.hbm [resolvable:$true] %s96
      %102 = dma.vmem_to_hbm [thread:$0]  %s95, 256, %s97, [#allocation4], 128, 128, 8
    $region25: #{tpu_custom_call.1} parent=1 // pred_fallthru
      _
    // Predicated region
    $region26: #{tpu_custom_call.1} parent=1 // pred_check
      _
    $region27: #{tpu_custom_call.1} parent=1 // pred_check_branch
      %104 = sbr.rel (0) target = $region29
    $region28: #{tpu_custom_call.1} parent=1 // pred_region
      %106 = dma.done [#allocation4], 256
    $region29: #{tpu_custom_call.1} parent=1 // pred_fallthru
      _
    %107 = vsyncpa [#allocation3], 1
    %108 = vsyncpa [#allocation6], 1
    %109 = vsyncpa [#allocation4], 1

</llo_original>
